<compile_context>
chip_gen: v7x
topology: tpu7x:2x2x1
jax: 0.10.0
libtpu: 0.0.40
codegen_flags: <defaults>
</compile_context>

<pallas_src>
import jax
import jax.numpy as jnp
from jax.experimental import pallas as pl
from jax.experimental.pallas import tpu as pltpu

_SUBLANE = 8


def _round_up(x, m):
    return ((x + m - 1) // m) * m


def _mlp_kernel(state_ref, w1_ref, b1_ref, w2_ref, b2_ref, out_ref):
    # Fused matmul -> bias -> ReLU -> matmul -> bias on one batch tile.
    x = state_ref[...]                                                # [TB, D_in]
    h = jnp.dot(x, w1_ref[...], preferred_element_type=jnp.float32)   # [TB, H]
    h = jnp.maximum(h + b1_ref[...], 0.0)                             # bias + ReLU (f32)
    y = jnp.dot(h, w2_ref[...], preferred_element_type=jnp.float32)   # [TB, A]
    out_ref[...] = (y + b2_ref[...]).astype(out_ref.dtype)


def ddpg_network_forward(state, w1, b1, w2, b2, *, block_b=512, min_grid_steps=1):
    """Forward pass of the DDPG Network.

    state: [B, D_in] f32; w1: [D_in, H]; b1: [1, H]; w2: [H, A]; b2: [1, A]
    (weights stored transposed relative to torch.nn.Linear).  Returns [B, A].

    block_b:        max batch-tile rows (keep large: fewest grid steps wins).
    min_grid_steps: set to 2 on v7x (2 TensorCores/chip) for large B so the
                    "parallel" batch axis can be sharded across both cores;
                    leave at 1 on v5e/v6e (single TC -> fewest steps).
    """
    B, D_in = state.shape
    H = w1.shape[1]
    A = w2.shape[1]

    # Batch tiling: as few grid steps as possible, sublane-aligned tiles,
    # and at most 7 rows of padding waste.
    B8 = _round_up(B, _SUBLANE)
    steps = max(pl.cdiv(B8, min(block_b, B8)), min_grid_steps)
    TB = _round_up(pl.cdiv(B8, steps), _SUBLANE)
    Bp = steps * TB

    state_p = state if Bp == B else jnp.pad(state, ((0, Bp - B), (0, 0)))

    cost = pl.CostEstimate(
        flops=2 * Bp * (D_in * H + H * A),
        transcendentals=0,
        bytes_accessed=4 * (Bp * D_in + D_in * H + H + H * A + A + Bp * A),
    )

    resident = pl.Buffered(1)  # constant-index blocks need no double-buffering

    out = pl.pallas_call(
        _mlp_kernel,
        out_shape=jax.ShapeDtypeStruct((Bp, A), jnp.float32),
        grid=(steps,),
        in_specs=[
            # Batch-tiled activations: new block per grid step; D_in is a
            # full-dim last axis (no lane padding in HBM).
            pl.BlockSpec((TB, D_in), lambda i: (i, 0)),
            # Parameters: constant index_map -> resident in VMEM across steps.
            pl.BlockSpec((D_in, H), lambda i: (0, 0), pipeline_mode=resident),
            pl.BlockSpec((1, H), lambda i: (0, 0), pipeline_mode=resident),
            pl.BlockSpec((H, A), lambda i: (0, 0), pipeline_mode=resident),
            pl.BlockSpec((1, A), lambda i: (0, 0), pipeline_mode=resident),
        ],
        # Unpadded A as a full-dim last axis: dense [Bp, A] output, no
        # 16x-padded writeback and no epilogue slice over the action dim.
        out_specs=pl.BlockSpec((TB, A), lambda i: (i, 0)),
        compiler_params=pltpu.CompilerParams(
            dimension_semantics=("parallel",)),
        cost_estimate=cost,
    )(state_p, w1, b1, w2, b2)

    # Padded batch rows hold relu(b1)@w2+b2 garbage -> slice only if we padded.
    return out if Bp == B else out[:B]


def init_params(key, input_dim, hidden, action_dim):
    """nn.Linear-style U(-1/sqrt(fan_in), 1/sqrt(fan_in)) init.

    Weights are stored transposed ((in, out)) so the kernel does plain
    row-major matmuls.  Any one-time layout work (e.g. padding if H/A are
    scaled up) belongs here, not in the per-call forward path.
    """
    k1, k2, k3, k4 = jax.random.split(key, 4)
    bnd1 = 1.0 / jnp.sqrt(jnp.float32(input_dim))
    bnd2 = 1.0 / jnp.sqrt(jnp.float32(hidden))
    w1 = jax.random.uniform(k1, (input_dim, hidden), jnp.float32, -bnd1, bnd1)
    b1 = jax.random.uniform(k2, (1, hidden), jnp.float32, -bnd1, bnd1)
    w2 = jax.random.uniform(k3, (hidden, action_dim), jnp.float32, -bnd2, bnd2)
    b2 = jax.random.uniform(k4, (1, action_dim), jnp.float32, -bnd2, bnd2)
    return w1, b1, w2, b2


if __name__ == "__main__":
    # Shapes consistent with the module: input_shape=(16,), hidden=32, action=8.
    B, D_IN, HIDDEN, ACTION = 64, 16, 32, 8

    key = jax.random.PRNGKey(0)
    k_state, k_params, k_state2 = jax.random.split(key, 3)

    state = jax.random.normal(k_state, (B, D_IN), jnp.float32)
    w1, b1, w2, b2 = init_params(k_params, D_IN, HIDDEN, ACTION)

    # Single-grid-step path (v5e/v6e sweet spot: fewest steps, no batch pad).
    out = ddpg_network_forward(state, w1, b1, w2, b2)
    out = jax.block_until_ready(out)
    ref = jnp.maximum(state @ w1 + b1, 0.0) @ w2 + b2
    assert out.shape == (B, ACTION)
    assert jnp.allclose(out, ref, atol=1e-5, rtol=1e-5)

    # Multi-step path with batch padding/slicing (the v7x configuration:
    # >=2 grid steps so both TensorCores get a slice of the batch).
    B2 = 50
    state2 = jax.random.normal(k_state2, (B2, D_IN), jnp.float32)
    out2 = ddpg_network_forward(state2, w1, b1, w2, b2, min_grid_steps=2)
    out2 = jax.block_until_ready(out2)
    ref2 = jnp.maximum(state2 @ w1 + b1, 0.0) @ w2 + b2
    assert out2.shape == (B2, ACTION)
    assert jnp.allclose(out2, ref2, atol=1e-5, rtol=1e-5)

    print("KERNEL_OK")
</pallas_src>

<mosaic_0001>
module attributes {stable_mosaic.version = 11 : i64} {
  func.func @_mlp_kernel(%arg0: i32, %arg1: memref<64x16xf32, #tpu.memory_space<vmem>>, %arg2: memref<16x32xf32, #tpu.memory_space<vmem>>, %arg3: memref<1x32xf32, #tpu.memory_space<vmem>>, %arg4: memref<32x8xf32, #tpu.memory_space<vmem>>, %arg5: memref<1x8xf32, #tpu.memory_space<vmem>>, %arg6: memref<64x8xf32, #tpu.memory_space<vmem>>) attributes {dimension_semantics = [#tpu.dimension_semantics<parallel>], iteration_bounds = array<i64: 1>, scalar_prefetch = 0 : i64, scratch_operands = 0 : i64, tpu.core_type = #tpu.core_type<tc>, window_params = [{transform_indices = @transform_0, window_bounds = array<i64: 64, 16>}, {pipeline_mode = #tpu.pipeline_mode<synchronous>, transform_indices = @transform_1, window_bounds = array<i64: 16, 32>}, {pipeline_mode = #tpu.pipeline_mode<synchronous>, transform_indices = @transform_2, window_bounds = array<i64: 1, 32>}, {pipeline_mode = #tpu.pipeline_mode<synchronous>, transform_indices = @transform_3, window_bounds = array<i64: 32, 8>}, {pipeline_mode = #tpu.pipeline_mode<synchronous>, transform_indices = @transform_4, window_bounds = array<i64: 1, 8>}, {transform_indices = @transform_5, window_bounds = array<i64: 64, 8>}]} {
    %c0 = arith.constant 0 : index
    %c0_0 = arith.constant 0 : index
    %0 = vector.load %arg1[%c0, %c0_0] : memref<64x16xf32, #tpu.memory_space<vmem>>, vector<64x16xf32>
    %c0_1 = arith.constant 0 : index
    %c0_2 = arith.constant 0 : index
    %1 = vector.load %arg2[%c0_1, %c0_2] : memref<16x32xf32, #tpu.memory_space<vmem>>, vector<16x32xf32>
    %cst = arith.constant dense<0.000000e+00> : vector<64x32xf32>
    %2 = tpu.matmul %0, %1, %cst {dimension_numbers = #tpu.dot_dimension_numbers<[1], [0], [0], [1], [0, 0, 1, 1], [], []>} : vector<64x16xf32>, vector<16x32xf32>, vector<64x32xf32> -> vector<64x32xf32>
    %c0_3 = arith.constant 0 : index
    %c0_4 = arith.constant 0 : index
    %3 = vector.load %arg3[%c0_3, %c0_4] : memref<1x32xf32, #tpu.memory_space<vmem>>, vector<1x32xf32>
    %4 = vector.broadcast %3 : vector<1x32xf32> to vector<64x32xf32>
    %5 = arith.addf %2, %4 : vector<64x32xf32>
    %cst_5 = arith.constant 0.000000e+00 : f32
    %6 = vector.broadcast %cst_5 : f32 to vector<64x32xf32>
    %7 = arith.maximumf %5, %6 : vector<64x32xf32>
    %c0_6 = arith.constant 0 : index
    %c0_7 = arith.constant 0 : index
    %8 = vector.load %arg4[%c0_6, %c0_7] : memref<32x8xf32, #tpu.memory_space<vmem>>, vector<32x8xf32>
    %cst_8 = arith.constant dense<0.000000e+00> : vector<64x8xf32>
    %9 = tpu.matmul %7, %8, %cst_8 {dimension_numbers = #tpu.dot_dimension_numbers<[1], [0], [0], [1], [0, 0, 1, 1], [], []>} : vector<64x32xf32>, vector<32x8xf32>, vector<64x8xf32> -> vector<64x8xf32>
    %c0_9 = arith.constant 0 : index
    %c0_10 = arith.constant 0 : index
    %10 = vector.load %arg5[%c0_9, %c0_10] : memref<1x8xf32, #tpu.memory_space<vmem>>, vector<1x8xf32>
    %11 = vector.broadcast %10 : vector<1x8xf32> to vector<64x8xf32>
    %12 = arith.addf %9, %11 : vector<64x8xf32>
    %c0_11 = arith.constant 0 : index
    %c0_12 = arith.constant 0 : index
    %13 = vector.load %arg6[%c0_11, %c0_12] : memref<64x8xf32, #tpu.memory_space<vmem>>, vector<64x8xf32>
    tpu.vector_store %arg6[%c0_11, %c0_12], %12 {strides = array<i32>} : memref<64x8xf32, #tpu.memory_space<vmem>>, vector<64x8xf32>,
    return
  }
  func.func @transform_0(%arg0: i32) -> (i32, i32) {
    %c0_i32 = arith.constant 0 : i32
    %c0_i32_0 = arith.constant 0 : i32
    return %arg0, %c0_i32 : i32, i32
  }
  func.func @transform_1(%arg0: i32) -> (i32, i32) {
    %c0_i32 = arith.constant 0 : i32
    %c0_i32_0 = arith.constant 0 : i32
    %c0_i32_1 = arith.constant 0 : i32
    return %c0_i32, %c0_i32_0 : i32, i32
  }
  func.func @transform_2(%arg0: i32) -> (i32, i32) {
    %c0_i32 = arith.constant 0 : i32
    %c0_i32_0 = arith.constant 0 : i32
    %c0_i32_1 = arith.constant 0 : i32
    return %c0_i32, %c0_i32_0 : i32, i32
  }
  func.func @transform_3(%arg0: i32) -> (i32, i32) {
    %c0_i32 = arith.constant 0 : i32
    %c0_i32_0 = arith.constant 0 : i32
    %c0_i32_1 = arith.constant 0 : i32
    return %c0_i32, %c0_i32_0 : i32, i32
  }
  func.func @transform_4(%arg0: i32) -> (i32, i32) {
    %c0_i32 = arith.constant 0 : i32
    %c0_i32_0 = arith.constant 0 : i32
    %c0_i32_1 = arith.constant 0 : i32
    return %c0_i32, %c0_i32_0 : i32, i32
  }
  func.func @transform_5(%arg0: i32) -> (i32, i32) {
    %c0_i32 = arith.constant 0 : i32
    %c0_i32_0 = arith.constant 0 : i32
    return %arg0, %c0_i32 : i32, i32
  }
}

</mosaic_0001>

<llo_original>
// kernel: tpu_custom_call.1
$region0: #{tpu_custom_call.1}
  #allocation0 [shape = 'u32[]', space=smem, size = 0x4, offset = 0x4, fixed_abs, tag = 'smem constant byte address 0x4 - core index']
  #allocation1 [shape = 'u32[144,128]{1,0:T(1,128)}', space=vmem, size = 0x12000, scoped, tag = 'internal scratch']
  %s0 = inlined_call_operand.vmem [shape: f32[64,16], index: 0, kind: input, shape index: {}]
  %s1 = inlined_call_operand.vmem [shape: f32[16,32], index: 1, kind: input, shape index: {}]
  %s2 = inlined_call_operand.vmem [shape: f32[1,32], index: 2, kind: input, shape index: {}]
  %s3 = inlined_call_operand.vmem [shape: f32[32,8], index: 3, kind: input, shape index: {}]
  %s4 = inlined_call_operand.vmem [shape: f32[1,8], index: 4, kind: input, shape index: {}]
  %s5 = inlined_call_operand.vmem [shape: f32[64,8], index: 5, kind: output, shape index: {}]
  %s6 = sld [smem:[#allocation0]]
  $region30: #{tpu_custom_call.1} parent=0
    _
  %s8 = ssub.s32 1, %s6
  %s9 = scalar_select 0, %s8, %s6
  // Predicated region
  $region2: #{tpu_custom_call.1} parent=0 // pred_check
    _
  $region3: #{tpu_custom_call.1} parent=0 // pred_check_branch
    %11 = sbr.rel (0) target = $region5
  $region4: #{tpu_custom_call.1} parent=0 // pred_region
    _
  $region5: #{tpu_custom_call.1} parent=0 // pred_fallthru
    _
  // Predicated region
  $region6: #{tpu_custom_call.1} parent=0 // pred_check
    _
  $region7: #{tpu_custom_call.1} parent=0 // pred_check_branch
    %13 = sbr.rel (0) target = $region9
  $region8: #{tpu_custom_call.1} parent=0 // pred_region
    _
  $region9: #{tpu_custom_call.1} parent=0 // pred_fallthru
    _
  // Predicated region
  $region10: #{tpu_custom_call.1} parent=0 // pred_check
    _
  $region11: #{tpu_custom_call.1} parent=0 // pred_check_branch
    %15 = sbr.rel (0) target = $region13
  $region12: #{tpu_custom_call.1} parent=0 // pred_region
    _
  $region13: #{tpu_custom_call.1} parent=0 // pred_fallthru
    _
  // Predicated region
  $region14: #{tpu_custom_call.1} parent=0 // pred_check
    _
  $region15: #{tpu_custom_call.1} parent=0 // pred_check_branch
    %17 = sbr.rel (0) target = $region17
  $region16: #{tpu_custom_call.1} parent=0 // pred_region
    _
  $region17: #{tpu_custom_call.1} parent=0 // pred_fallthru
    _
  // Predicated region
  $region18: #{tpu_custom_call.1} parent=0 // pred_check
    _
  $region19: #{tpu_custom_call.1} parent=0 // pred_check_branch
    %19 = sbr.rel (0) target = $region21
  $region20: #{tpu_custom_call.1} parent=0 // pred_region
    _
  $region21: #{tpu_custom_call.1} parent=0 // pred_fallthru
    _
  %v20 = vld [vmem:[%s0] sm:$0xff]
  %v21 = vld [vmem:[%s0 + $0x8] sm:$0xff]
  %v22 = vld [vmem:[%s0 + $0x10] sm:$0xff]
  %v23 = vld [vmem:[%s0 + $0x18] sm:$0xff]
  %v24 = vld [vmem:[%s0 + $0x20] sm:$0xff]
  %v25 = vld [vmem:[%s0 + $0x28] sm:$0xff]
  %v26 = vld [vmem:[%s0 + $0x30] sm:$0xff]
  %v27 = vld [vmem:[%s0 + $0x38] sm:$0xff]
  %v28 = vld [vmem:[%s1] sm:$0xff]
  %v29 = vld [vmem:[%s1 + $0x8] sm:$0xff]
  %v30 = vld [vmem:[%s2] sm:$0x1]
  %v32 = vlaneseq
  %v33 = vshrl.u32 %v32, 7
  %v34 = vsub.s32 0, %v33
  %v35 = vrot.slane %v30, %v34
  %vm37 = vcmask 130048
  %v39 = vsel %vm37, %v20, 0
  %v42 = vsel %vm37, %v21, 0
  %v45 = vsel %vm37, %v22, 0
  %v48 = vsel %vm37, %v23, 0
  %v51 = vsel %vm37, %v24, 0
  %v54 = vsel %vm37, %v25, 0
  %v57 = vsel %vm37, %v26, 0
  %v60 = vsel %vm37, %v27, 0
  %62 = vmatprep.subr.mxu0 0.0
  %63 = vmatpush1.msra.mxu0 %v28
  %64 = vmatprep.subr.mxu0 0.0
  %65 = vmatpush1.msra.mxu0 %v29
  %66 = vmatprep.subr.mxu0 0.0
  %67 = vmatpush1.msra.mxu0 0.0
  %68 = vmatprep.subr.mxu0 0.0
  %69 = vmatpush1.msra.mxu0 0.0
  %70 = vmatprep.subr.mxu0 0.0
  %71 = vmatpush1.msra.mxu0 0.0
  %72 = vmatprep.subr.mxu0 0.0
  %73 = vmatpush1.msra.mxu0 0.0
  %74 = vmatprep.subr.mxu0 0.0
  %75 = vmatpush1.msra.mxu0 0.0
  %76 = vmatprep.subr.mxu0 0.0
  %77 = vmatpush1.msra.mxu0 0.0
  %78 = vmatprep.subr.mxu0 0.0
  %79 = vmatpush1.msra.mxu0 0.0
  %80 = vmatprep.subr.mxu0 0.0
  %81 = vmatpush1.msra.mxu0 0.0
  %82 = vmatprep.subr.mxu0 0.0
  %83 = vmatpush1.msra.mxu0 0.0
  %84 = vmatprep.subr.mxu0 0.0
  %85 = vmatpush1.msra.mxu0 0.0
  %86 = vmatprep.subr.mxu0 0.0
  %87 = vmatpush1.msra.mxu0 0.0
  %88 = vmatprep.subr.mxu0 0.0
  %89 = vmatpush1.msra.mxu0 0.0
  %90 = vmatprep.subr.mxu0 0.0
  %91 = vmatpush1.msra.mxu0 0.0
  %92 = vmatprep.subr.mxu0 0.0
  %93 = vmatpush1.msra.mxu0 0.0
  %94 = vmatprep.subr.mxu0 0.0
  %95 = vmatpush1.msra.mxu0 0.0
  %96 = vmatprep.subr.mxu0 0.0
  %97 = vmatpush1.msra.mxu0 0.0
  %98 = vmatprep.subr.mxu0 0.0
  %99 = vmatpush1.msra.mxu0 0.0
  %100 = vmatprep.subr.mxu0 0.0
  %101 = vmatpush1.msra.mxu0 0.0
  %102 = vmatprep.subr.mxu0 0.0
  %103 = vmatpush1.msra.mxu0 0.0
  %104 = vmatprep.subr.mxu0 0.0
  %105 = vmatpush1.msra.mxu0 0.0
  %106 = vmatprep.subr.mxu0 0.0
  %107 = vmatpush1.msra.mxu0 0.0
  %108 = vmatprep.subr.mxu0 0.0
  %109 = vmatpush1.msra.mxu0 0.0
  %110 = vmatprep.subr.mxu0 0.0
  %111 = vmatpush1.msra.mxu0 0.0
  %112 = vmatprep.subr.mxu0 0.0
  %113 = vmatpush1.msra.mxu0 0.0
  %114 = vmatprep.subr.mxu0 0.0
  %115 = vmatpush1.msra.mxu0 0.0
  %116 = vmatprep.subr.mxu0 0.0
  %117 = vmatpush1.msra.mxu0 0.0
  %118 = vmatprep.subr.mxu0 0.0
  %119 = vmatpush1.msra.mxu0 0.0
  %120 = vmatprep.subr.mxu0 0.0
  %121 = vmatpush1.msra.mxu0 0.0
  %122 = vmatprep.subr.mxu0 0.0
  %123 = vmatpush1.msra.mxu0 0.0
  %124 = vmatprep.subr.mxu0 0.0
  %125 = vmatpush1.msra.mxu0 0.0
  %126 = vmatprep.mubr.f32.mxu0 0.0
  %127 = vmatmul.mubr.f32.gmra.mrb[0].mxu0 %v39
  %v128 = vpop.f32.mrb[0].mxu0
  %v129 = vadd.f32 %v35, %v128
  %v130 = vpop.f32.mrb[0].mxu0
  %131 = vmatprep.mubr.f32.mxu0 0.0
  %132 = vmatmul.mubr.f32.gmra.mrb[0].mxu0 %v42
  %v133 = vpop.f32.mrb[0].mxu0
  %v134 = vadd.f32 %v35, %v133
  %v135 = vpop.f32.mrb[0].mxu0
  %136 = vmatprep.mubr.f32.mxu0 0.0
  %137 = vmatmul.mubr.f32.gmra.mrb[0].mxu0 %v45
  %v138 = vpop.f32.mrb[0].mxu0
  %v139 = vadd.f32 %v35, %v138
  %v140 = vpop.f32.mrb[0].mxu0
  %141 = vmatprep.mubr.f32.mxu0 0.0
  %142 = vmatmul.mubr.f32.gmra.mrb[0].mxu0 %v48
  %v143 = vpop.f32.mrb[0].mxu0
  %v144 = vadd.f32 %v35, %v143
  %v145 = vpop.f32.mrb[0].mxu0
  %146 = vmatprep.mubr.f32.mxu0 0.0
  %147 = vmatmul.mubr.f32.gmra.mrb[0].mxu0 %v51
  %v148 = vpop.f32.mrb[0].mxu0
  %v149 = vadd.f32 %v35, %v148
  %v150 = vpop.f32.mrb[0].mxu0
  %151 = vmatprep.mubr.f32.mxu0 0.0
  %152 = vmatmul.mubr.f32.gmra.mrb[0].mxu0 %v54
  %v153 = vpop.f32.mrb[0].mxu0
  %v154 = vadd.f32 %v35, %v153
  %v155 = vpop.f32.mrb[0].mxu0
  %156 = vmatprep.mubr.f32.mxu0 0.0
  %157 = vmatmul.mubr.f32.gmra.mrb[0].mxu0 %v57
  %v158 = vpop.f32.mrb[0].mxu0
  %v159 = vadd.f32 %v35, %v158
  %v160 = vpop.f32.mrb[0].mxu0
  %161 = vmatprep.mubr.f32.mxu0 0.0
  %162 = vmatmul.mubr.f32.gmra.mrb[0].mxu0 %v60
  %v163 = vpop.f32.mrb[0].mxu0
  %v164 = vadd.f32 %v35, %v163
  %v165 = vpop.f32.mrb[0].mxu0
  %166 = vdwg.mxu0
  %v167 = vmax.f32 %v129, 0.0
  %v168 = vmax.f32 %v134, 0.0
  %v169 = vmax.f32 %v139, 0.0
  %v170 = vmax.f32 %v144, 0.0
  %v171 = vmax.f32 %v149, 0.0
  %v172 = vmax.f32 %v154, 0.0
  %v173 = vmax.f32 %v159, 0.0
  %v174 = vmax.f32 %v164, 0.0
  %v175 = vld [vmem:[%s3] sm:$0xff]
  %v176 = vld [vmem:[%s3 + $0x8] sm:$0xff]
  %v177 = vld [vmem:[%s3 + $0x10] sm:$0xff]
  %v178 = vld [vmem:[%s3 + $0x18] sm:$0xff]
  %v179 = vld [vmem:[%s4] sm:$0x1]
  %v181 = vlaneseq
  %v182 = vshrl.u32 %v181, 7
  %v183 = vsub.s32 0, %v182
  %v184 = vrot.slane %v179, %v183
  %vm186 = vcmask 261120
  %v188 = vsel %vm186, %v167, 0
  %v191 = vsel %vm186, %v168, 0
  %v194 = vsel %vm186, %v169, 0
  %v197 = vsel %vm186, %v170, 0
  %v200 = vsel %vm186, %v171, 0
  %v203 = vsel %vm186, %v172, 0
  %v206 = vsel %vm186, %v173, 0
  %v209 = vsel %vm186, %v174, 0
  %211 = vmatprep.subr.mxu0 0.0
  %212 = vmatpush1.msra.mxu0 %v175
  %213 = vmatprep.subr.mxu0 0.0
  %214 = vmatpush1.msra.mxu0 %v176
  %215 = vmatprep.subr.mxu0 0.0
  %216 = vmatpush1.msra.mxu0 %v177
  %217 = vmatprep.subr.mxu0 0.0
  %218 = vmatpush1.msra.mxu0 %v178
  %219 = vmatprep.subr.mxu0 0.0
  %220 = vmatpush1.msra.mxu0 0.0
  %221 = vmatprep.subr.mxu0 0.0
  %222 = vmatpush1.msra.mxu0 0.0
  %223 = vmatprep.subr.mxu0 0.0
  %224 = vmatpush1.msra.mxu0 0.0
  %225 = vmatprep.subr.mxu0 0.0
  %226 = vmatpush1.msra.mxu0 0.0
  %227 = vmatprep.subr.mxu0 0.0
  %228 = vmatpush1.msra.mxu0 0.0
  %229 = vmatprep.subr.mxu0 0.0
  %230 = vmatpush1.msra.mxu0 0.0
  %231 = vmatprep.subr.mxu0 0.0
  %232 = vmatpush1.msra.mxu0 0.0
  %233 = vmatprep.subr.mxu0 0.0
  %234 = vmatpush1.msra.mxu0 0.0
  %235 = vmatprep.subr.mxu0 0.0
  %236 = vmatpush1.msra.mxu0 0.0
  %237 = vmatprep.subr.mxu0 0.0
  %238 = vmatpush1.msra.mxu0 0.0
  %239 = vmatprep.subr.mxu0 0.0
  %240 = vmatpush1.msra.mxu0 0.0
  %241 = vmatprep.subr.mxu0 0.0
  %242 = vmatpush1.msra.mxu0 0.0
  %243 = vmatprep.subr.mxu0 0.0
  %244 = vmatpush1.msra.mxu0 0.0
  %245 = vmatprep.subr.mxu0 0.0
  %246 = vmatpush1.msra.mxu0 0.0
  %247 = vmatprep.subr.mxu0 0.0
  %248 = vmatpush1.msra.mxu0 0.0
  %249 = vmatprep.subr.mxu0 0.0
  %250 = vmatpush1.msra.mxu0 0.0
  %251 = vmatprep.subr.mxu0 0.0
  %252 = vmatpush1.msra.mxu0 0.0
  %253 = vmatprep.subr.mxu0 0.0
  %254 = vmatpush1.msra.mxu0 0.0
  %255 = vmatprep.subr.mxu0 0.0
  %256 = vmatpush1.msra.mxu0 0.0
  %257 = vmatprep.subr.mxu0 0.0
  %258 = vmatpush1.msra.mxu0 0.0
  %259 = vmatprep.subr.mxu0 0.0
  %260 = vmatpush1.msra.mxu0 0.0
  %261 = vmatprep.subr.mxu0 0.0
  %262 = vmatpush1.msra.mxu0 0.0
  %263 = vmatprep.subr.mxu0 0.0
  %264 = vmatpush1.msra.mxu0 0.0
  %265 = vmatprep.subr.mxu0 0.0
  %266 = vmatpush1.msra.mxu0 0.0
  %267 = vmatprep.subr.mxu0 0.0
  %268 = vmatpush1.msra.mxu0 0.0
  %269 = vmatprep.subr.mxu0 0.0
  %270 = vmatpush1.msra.mxu0 0.0
  %271 = vmatprep.subr.mxu0 0.0
  %272 = vmatpush1.msra.mxu0 0.0
  %273 = vmatprep.subr.mxu0 0.0
  %274 = vmatpush1.msra.mxu0 0.0
  %275 = vmatprep.mubr.f32.mxu0 0.0
  %276 = vmatmul.mubr.f32.gmra.mrb[0].mxu0 %v188
  %v277 = vpop.f32.mrb[0].mxu0
  %v278 = vadd.f32 %v184, %v277
  %v279 = vpop.f32.mrb[0].mxu0
  %280 = vmatprep.mubr.f32.mxu0 0.0
  %281 = vmatmul.mubr.f32.gmra.mrb[0].mxu0 %v191
  %v282 = vpop.f32.mrb[0].mxu0
  %v283 = vadd.f32 %v184, %v282
  %v284 = vpop.f32.mrb[0].mxu0
  %285 = vmatprep.mubr.f32.mxu0 0.0
  %286 = vmatmul.mubr.f32.gmra.mrb[0].mxu0 %v194
  %v287 = vpop.f32.mrb[0].mxu0
  %v288 = vadd.f32 %v184, %v287
  %v289 = vpop.f32.mrb[0].mxu0
  %290 = vmatprep.mubr.f32.mxu0 0.0
  %291 = vmatmul.mubr.f32.gmra.mrb[0].mxu0 %v197
  %v292 = vpop.f32.mrb[0].mxu0
  %v293 = vadd.f32 %v184, %v292
  %v294 = vpop.f32.mrb[0].mxu0
  %295 = vmatprep.mubr.f32.mxu0 0.0
  %296 = vmatmul.mubr.f32.gmra.mrb[0].mxu0 %v200
  %v297 = vpop.f32.mrb[0].mxu0
  %v298 = vadd.f32 %v184, %v297
  %v299 = vpop.f32.mrb[0].mxu0
  %300 = vmatprep.mubr.f32.mxu0 0.0
  %301 = vmatmul.mubr.f32.gmra.mrb[0].mxu0 %v203
  %v302 = vpop.f32.mrb[0].mxu0
  %v303 = vadd.f32 %v184, %v302
  %v304 = vpop.f32.mrb[0].mxu0
  %305 = vmatprep.mubr.f32.mxu0 0.0
  %306 = vmatmul.mubr.f32.gmra.mrb[0].mxu0 %v206
  %v307 = vpop.f32.mrb[0].mxu0
  %v308 = vadd.f32 %v184, %v307
  %v309 = vpop.f32.mrb[0].mxu0
  %310 = vmatprep.mubr.f32.mxu0 0.0
  %311 = vmatmul.mubr.f32.gmra.mrb[0].mxu0 %v209
  %v312 = vpop.f32.mrb[0].mxu0
  %v313 = vadd.f32 %v184, %v312
  %v314 = vpop.f32.mrb[0].mxu0
  %315 = vdwg.mxu0
  %vm316 = vcmask 64512
  %317 = vst.msk [vmem:[%s5] sm:$0xff] %vm316, %v278
  %318 = vst.msk [vmem:[%s5 + $0x8] sm:$0xff] %vm316, %v283
  %319 = vst.msk [vmem:[%s5 + $0x10] sm:$0xff] %vm316, %v288
  %320 = vst.msk [vmem:[%s5 + $0x18] sm:$0xff] %vm316, %v293
  %321 = vst.msk [vmem:[%s5 + $0x20] sm:$0xff] %vm316, %v298
  %322 = vst.msk [vmem:[%s5 + $0x28] sm:$0xff] %vm316, %v303
  %323 = vst.msk [vmem:[%s5 + $0x30] sm:$0xff] %vm316, %v308
  %324 = vst.msk [vmem:[%s5 + $0x38] sm:$0xff] %vm316, %v313
  // Predicated region
  $region22: #{tpu_custom_call.1} parent=0 // pred_check
    _
  $region23: #{tpu_custom_call.1} parent=0 // pred_check_branch
    %326 = sbr.rel (0) target = $region25
  $region24: #{tpu_custom_call.1} parent=0 // pred_region
    _
  $region25: #{tpu_custom_call.1} parent=0 // pred_fallthru
    _
  // Predicated region
  $region26: #{tpu_custom_call.1} parent=0 // pred_check
    _
  $region27: #{tpu_custom_call.1} parent=0 // pred_check_branch
    %328 = sbr.rel (0) target = $region29
  $region28: #{tpu_custom_call.1} parent=0 // pred_region
    _
  $region29: #{tpu_custom_call.1} parent=0 // pred_fallthru
    _

</llo_original>
